<compile_context>
chip_gen: v6e
topology: v6e:2x2x1
jax: 0.10.0
libtpu: 0.0.40
codegen_flags: <defaults>
</compile_context>

<pallas_src>
import jax
import jax.numpy as jnp
from jax.experimental import pallas as pl
from jax.experimental.pallas import tpu as pltpu

_LANE = 128
_CHUNK_ROWS = 512          # inner streaming chunk (512 x 128 x 4 B = 256 KiB f32 temps)
_MAX_TILE_ROWS = 8192      # 8192 x 128 x 4 B = 4 MiB f32 per input tile; multiple of _CHUNK_ROWS


def _round_up(x, m):
    return ((x + m - 1) // m) * m


def _sublane_multiple(dtype):
    """Minimum sublane tiling multiple for a dtype (f32->8, bf16->16, int8/bool->32)."""
    bits = jnp.dtype(dtype).itemsize * 8
    return max(8, 256 // bits)


def _make_dice_kernel(tile_rows, chunk_rows, total, needs_mask):
    """Per-tile lane-wise partial sums, streamed chunk-by-chunk."""
    num_chunks = tile_rows // chunk_rows
    full_rows = total // _LANE        # rows completely filled with valid elements
    rem = total % _LANE               # valid lanes in the (optional) partial row

    def kernel(logits_ref, targets_ref, inter_ref, psum_ref):
        inter = jnp.zeros((1, _LANE), jnp.float32)
        psum = jnp.zeros((1, _LANE), jnp.float32)
        if needs_mask:
            tile_base = pl.program_id(0) * tile_rows

        # Static (fully unrolled) chunk loop: bounded vreg/VMEM pressure, keeps
        # the body a pure vld -> VPU/EUP -> sublane-reduce stream.
        for c in range(num_chunks):
            r0 = c * chunk_rows
            x = logits_ref[pl.ds(r0, chunk_rows), :].astype(jnp.float32)
            t = targets_ref[pl.ds(r0, chunk_rows), :].astype(jnp.float32)
            # sigmoid(x) == 0.5 * tanh(x / 2) + 0.5  (single EUP op, exact)
            p = 0.5 * jnp.tanh(0.5 * x) + 0.5

            if needs_mask:
                row = tile_base + r0 + jax.lax.broadcasted_iota(
                    jnp.int32, (chunk_rows, _LANE), 0)
                col = jax.lax.broadcasted_iota(
                    jnp.int32, (chunk_rows, _LANE), 1)
                valid = row < full_rows
                if rem:
                    valid = valid | ((row == full_rows) & (col < rem))
                # Suppress sigmoid(pad)=0.5 and any garbage from ragged blocks.
                p = jnp.where(valid, p, 0.0)
                t = jnp.where(valid, t, 0.0)

            inter = inter + jnp.sum(p * t, axis=0, keepdims=True)   # (1, 128)
            psum = psum + jnp.sum(p + t, axis=0, keepdims=True)     # (1, 128)

        # Direct lane-dense stores (no sublane concat/shuffle).
        inter_ref[0] = inter
        psum_ref[0] = psum

    return kernel


def dice_loss(logits, targets):
    """Pallas implementation of DiceLoss.forward (returns a scalar f32).

    Accepts narrow input dtypes (e.g. bf16 logits, int8/bool targets) to cut
    HBM traffic; all math is done in f32 inside the kernel.
    """
    assert logits.shape == targets.shape, "logits / targets must match in shape"
    smooth = 100.0
    total = int(logits.size)

    flat_l = logits.reshape(-1)
    flat_t = targets.reshape(-1)

    sub = max(_sublane_multiple(logits.dtype), _sublane_multiple(targets.dtype))
    rows = int(pl.cdiv(total, _LANE))

    if rows <= _CHUNK_ROWS:
        # Small input: a single tile that exactly covers the (rounded) rows.
        tile_rows = _round_up(max(rows, 1), sub)
        chunk_rows = tile_rows
        rows = tile_rows                      # tiny pad (<= 512 rows), negligible
    else:
        # >= 2 grid steps (both v7x TCs busy); tiles in 512-row multiples
        # (satisfies every dtype's sublane tiling and divides into chunks).
        tile_rows = min(_MAX_TILE_ROWS,
                        _round_up(int(pl.cdiv(rows, 2)), _CHUNK_ROWS))
        chunk_rows = _CHUNK_ROWS

    padded_total = rows * _LANE
    if padded_total != total:
        # Only pad to the lane/sublane boundary — never to a tile multiple.
        pad = padded_total - total
        flat_l = jnp.pad(flat_l, (0, pad))
        flat_t = jnp.pad(flat_t, (0, pad))

    logits2d = flat_l.reshape(rows, _LANE)
    targets2d = flat_t.reshape(rows, _LANE)

    num_tiles = int(pl.cdiv(rows, tile_rows))
    needs_mask = (padded_total != total) or (num_tiles * tile_rows != rows)

    kernel = _make_dice_kernel(tile_rows, chunk_rows, total, needs_mask)

    inter_p, psum_p = pl.pallas_call(
        kernel,
        out_shape=(
            jax.ShapeDtypeStruct((num_tiles, 1, _LANE), jnp.float32),
            jax.ShapeDtypeStruct((num_tiles, 1, _LANE), jnp.float32),
        ),
        grid_spec=pltpu.PrefetchScalarGridSpec(
            num_scalar_prefetch=0,
            grid=(num_tiles,),
            in_specs=[
                pl.BlockSpec((tile_rows, _LANE), lambda i: (i, 0)),
                pl.BlockSpec((tile_rows, _LANE), lambda i: (i, 0)),
            ],
            out_specs=[
                pl.BlockSpec((1, 1, _LANE), lambda i: (i, 0, 0)),
                pl.BlockSpec((1, 1, _LANE), lambda i: (i, 0, 0)),
            ],
        ),
        compiler_params=pltpu.CompilerParams(
            # Independent per-tile partials -> no carried state -> parallel
            # axis (shards across both TensorCores on v7x).
            dimension_semantics=("parallel",),
            # 2 inputs x 2 buffers x up to 4 MiB f32 tiles = 16 MiB, which
            # already equals v5e's scoped default; raise explicitly.
            vmem_limit_bytes=48 * 1024 * 1024,
        ),
    )(logits2d, targets2d)

    # Tiny cross-tile / cross-lane reduction in XLA (tree-sum).
    intersection = jnp.sum(inter_p)
    denom = jnp.sum(psum_p)               # == sum(probs) + sum(targets)
    return 1.0 - (2.0 * intersection + smooth) / (denom + smooth)


def _reference(logits, targets):
    probs = jax.nn.sigmoid(logits.astype(jnp.float32))
    t = targets.astype(jnp.float32)
    smooth = 100.0
    inter = jnp.sum(probs * t)
    return 1.0 - (2.0 * inter + smooth) / (jnp.sum(probs) + jnp.sum(t) + smooth)


if __name__ == "__main__":
    key = jax.random.PRNGKey(0)
    k1, k2, k3, k4, k5, k6 = jax.random.split(key, 6)

    # 1) Segmentation-style NCHW = (2, 4, 16, 16), f32, lane-aligned (no pad path).
    logits = jax.random.normal(k1, (2, 4, 16, 16), dtype=jnp.float32)
    targets = (jax.random.uniform(k2, (2, 4, 16, 16)) > 0.5).astype(jnp.float32)
    loss = dice_loss(logits, targets)
    jax.block_until_ready(loss)
    ref = _reference(logits, targets)
    assert jnp.allclose(loss, ref, atol=1e-5, rtol=1e-5), (loss, ref)

    # 2) Non-128-multiple shape: exercises lane padding + mask.
    logits2 = jax.random.normal(k3, (3, 5, 17, 13), dtype=jnp.float32)
    targets2 = (jax.random.uniform(k4, (3, 5, 17, 13)) > 0.5).astype(jnp.float32)
    loss2 = dice_loss(logits2, targets2)
    jax.block_until_ready(loss2)
    ref2 = _reference(logits2, targets2)
    assert jnp.allclose(loss2, ref2, atol=1e-5, rtol=1e-5), (loss2, ref2)

    # 3) Multi-tile path with a ragged last grid block (no tile-multiple pad).
    logits3 = jax.random.normal(k5, (2, 3, 128, 90), dtype=jnp.float32)
    targets3 = (jax.random.uniform(k6, (2, 3, 128, 90)) > 0.5).astype(jnp.float32)
    loss3 = dice_loss(logits3, targets3)
    jax.block_until_ready(loss3)
    ref3 = _reference(logits3, targets3)
    assert jnp.allclose(loss3, ref3, atol=1e-5, rtol=1e-5), (loss3, ref3)

    # 4) Narrow dtypes straight into the kernel (bf16 logits, int8 targets).
    logits4 = logits.astype(jnp.bfloat16)
    targets4 = targets.astype(jnp.int8)
    loss4 = dice_loss(logits4, targets4)
    jax.block_until_ready(loss4)
    ref4 = _reference(logits4, targets4)   # same bf16-quantized values, f32 math
    assert jnp.allclose(loss4, ref4, atol=1e-5, rtol=1e-5), (loss4, ref4)

    print("KERNEL_OK")
</pallas_src>

<mosaic_0001>
module attributes {stable_mosaic.version = 11 : i64} {
  func.func @kernel(%arg0: i32, %arg1: memref<16x128xf32, #tpu.memory_space<vmem>>, %arg2: memref<16x128xf32, #tpu.memory_space<vmem>>, %arg3: memref<1x1x128xf32, #tpu.memory_space<vmem>>, %arg4: memref<1x1x128xf32, #tpu.memory_space<vmem>>) attributes {dimension_semantics = [#tpu.dimension_semantics<parallel>], iteration_bounds = array<i64: 1>, scalar_prefetch = 0 : i64, scratch_operands = 0 : i64, tpu.core_type = #tpu.core_type<tc>, window_params = [{transform_indices = @transform_0, window_bounds = array<i64: 16, 128>}, {transform_indices = @transform_1, window_bounds = array<i64: 16, 128>}, {transform_indices = @transform_2, window_bounds = array<i64: 1, 1, 128>}, {transform_indices = @transform_3, window_bounds = array<i64: 1, 1, 128>}]} {
    %cst = arith.constant 0.000000e+00 : f32
    %0 = vector.broadcast %cst : f32 to vector<1x128xf32>
    %cst_0 = arith.constant 0.000000e+00 : f32
    %1 = vector.broadcast %cst_0 : f32 to vector<1x128xf32>
    %c0 = arith.constant 0 : index
    %c0_1 = arith.constant 0 : index
    %2 = vector.load %arg1[%c0, %c0_1] : memref<16x128xf32, #tpu.memory_space<vmem>>, vector<16x128xf32>
    %c0_2 = arith.constant 0 : index
    %c0_3 = arith.constant 0 : index
    %3 = vector.load %arg2[%c0_2, %c0_3] : memref<16x128xf32, #tpu.memory_space<vmem>>, vector<16x128xf32>
    %cst_4 = arith.constant 5.000000e-01 : f32
    %4 = vector.broadcast %cst_4 : f32 to vector<16x128xf32>
    %5 = arith.mulf %4, %2 : vector<16x128xf32>
    %6 = math.tanh %5 : vector<16x128xf32>
    %cst_5 = arith.constant 5.000000e-01 : f32
    %7 = vector.broadcast %cst_5 : f32 to vector<16x128xf32>
    %8 = arith.mulf %7, %6 : vector<16x128xf32>
    %cst_6 = arith.constant 5.000000e-01 : f32
    %9 = vector.broadcast %cst_6 : f32 to vector<16x128xf32>
    %10 = arith.addf %8, %9 : vector<16x128xf32>
    %11 = arith.mulf %10, %3 : vector<16x128xf32>
    %cst_7 = arith.constant dense<0.000000e+00> : vector<128xf32>
    %12 = vector.multi_reduction <add>, %11, %cst_7 [0] : vector<16x128xf32> to vector<128xf32>
    %13 = vector.shape_cast %12 : vector<128xf32> to vector<1x128xf32>
    %14 = arith.addf %0, %13 : vector<1x128xf32>
    %15 = arith.addf %10, %3 : vector<16x128xf32>
    %cst_8 = arith.constant dense<0.000000e+00> : vector<128xf32>
    %16 = vector.multi_reduction <add>, %15, %cst_8 [0] : vector<16x128xf32> to vector<128xf32>
    %17 = vector.shape_cast %16 : vector<128xf32> to vector<1x128xf32>
    %18 = arith.addf %1, %17 : vector<1x128xf32>
    %c0_9 = arith.constant 0 : index
    %c0_10 = arith.constant 0 : index
    %c0_11 = arith.constant 0 : index
    %19 = vector.load %arg3[%c0_9, %c0_10, %c0_11] : memref<1x1x128xf32, #tpu.memory_space<vmem>>, vector<1x1x128xf32>
    %20 = vector.shape_cast %19 : vector<1x1x128xf32> to vector<1x128xf32>
    %21 = vector.shape_cast %14 : vector<1x128xf32> to vector<1x1x128xf32>
    tpu.vector_store %arg3[%c0_9, %c0_10, %c0_11], %21 {strides = array<i32>} : memref<1x1x128xf32, #tpu.memory_space<vmem>>, vector<1x1x128xf32>,
    %c0_12 = arith.constant 0 : index
    %c0_13 = arith.constant 0 : index
    %c0_14 = arith.constant 0 : index
    %22 = vector.load %arg4[%c0_12, %c0_13, %c0_14] : memref<1x1x128xf32, #tpu.memory_space<vmem>>, vector<1x1x128xf32>
    %23 = vector.shape_cast %22 : vector<1x1x128xf32> to vector<1x128xf32>
    %24 = vector.shape_cast %18 : vector<1x128xf32> to vector<1x1x128xf32>
    tpu.vector_store %arg4[%c0_12, %c0_13, %c0_14], %24 {strides = array<i32>} : memref<1x1x128xf32, #tpu.memory_space<vmem>>, vector<1x1x128xf32>,
    return
  }
  func.func @transform_0(%arg0: i32) -> (i32, i32) {
    %c0_i32 = arith.constant 0 : i32
    %c0_i32_0 = arith.constant 0 : i32
    return %arg0, %c0_i32 : i32, i32
  }
  func.func @transform_1(%arg0: i32) -> (i32, i32) {
    %c0_i32 = arith.constant 0 : i32
    %c0_i32_0 = arith.constant 0 : i32
    return %arg0, %c0_i32 : i32, i32
  }
  func.func @transform_2(%arg0: i32) -> (i32, i32, i32) {
    %c0_i32 = arith.constant 0 : i32
    %c0_i32_0 = arith.constant 0 : i32
    %c0_i32_1 = arith.constant 0 : i32
    return %arg0, %c0_i32, %c0_i32_0 : i32, i32, i32
  }
  func.func @transform_3(%arg0: i32) -> (i32, i32, i32) {
    %c0_i32 = arith.constant 0 : i32
    %c0_i32_0 = arith.constant 0 : i32
    %c0_i32_1 = arith.constant 0 : i32
    return %arg0, %c0_i32, %c0_i32_0 : i32, i32, i32
  }
}

</mosaic_0001>

<llo_original>
// kernel: tpu_custom_call.1
$region0: #{tpu_custom_call.1}
  #allocation0 [shape = 'u32[]', space=smem, size = 0x4, offset = 0x4, fixed_abs, tag = 'smem constant byte address 0x4 - core index']
  #allocation1 [shape = 'u32[144,128]{1,0:T(1,128)}', space=vmem, size = 0x12000, scoped, tag = 'internal scratch']
  %s0 = inlined_call_operand.hbm [shape: f32[16,128], index: 0, kind: input, shape index: {}]
  %s1 = inlined_call_operand.hbm [shape: f32[16,128], index: 1, kind: input, shape index: {}]
  %s2 = inlined_call_operand.hbm [shape: f32[1,1,128], index: 2, kind: output, shape index: {0}]
  %s3 = inlined_call_operand.hbm [shape: f32[1,1,128], index: 3, kind: output, shape index: {1}]
  %4 = xla_tuple %s2, %s3
  %s5 = sld [smem:[#allocation0]]
  $region34: #{tpu_custom_call.1} parent=0
    _
  %s7 = ssub.s32 1, %s5
  %s8 = scalar_select 0, %s7, %s5
  $region1: #{tpu_custom_call.1} parent=0
    #allocation2 [shape = 'u8[8192]{0}', space=vmem, size = 0x2000, scoped, tag = 'input window, operand 0, single buffered']
    #allocation3 [shape = 's32[1]{0}', space=sflag, size = 0x4, scoped, tag = 'scoped memory for tpu_custom_call.1']
    #allocation4 [shape = 's32[1]{0}', space=sflag, size = 0x4, scoped, tag = 'scoped memory for tpu_custom_call.1']
    #allocation5 [shape = 'u8[8192]{0}', space=vmem, size = 0x2000, scoped, tag = 'input window, operand 1, single buffered']
    #allocation6 [shape = 's32[1]{0}', space=sflag, size = 0x4, scoped, tag = 'scoped memory for tpu_custom_call.1']
    #allocation7 [shape = 'u8[512]{0}', space=vmem, size = 0x400, scoped, tag = 'output window, operand 0, single buffered']
    #allocation8 [shape = 'u8[512]{0}', space=vmem, size = 0x400, scoped, tag = 'output window, operand 1, single buffered']
    #allocation9 [shape = 's32[1]{0}', space=sflag, size = 0x4, scoped, tag = 'scoped memory for tpu_custom_call.1']
    %9 = vsyncpa [#allocation3], 0
    %10 = vsyncpa [#allocation6], 0
    %11 = vsyncpa [#allocation4], 0
    %12 = vsyncpa [#allocation9], 0
    // Predicated region
    $region2: #{tpu_custom_call.1} parent=1 // pred_check
      _
    $region3: #{tpu_custom_call.1} parent=1 // pred_check_branch
      %14 = sbr.rel (0) target = $region5
    $region4: #{tpu_custom_call.1} parent=1 // pred_region
      %s16 = ssub.s32 256, 256
      %17 = vsyncadd [#allocation3], %s16
      %s18 = sshll.u32 [#allocation2], 4
      %s19 = int_to_ptr.vmem [resolvable:$true] %s18
      %24 = dma.hbm_to_vmem [thread:$0]  %s0, 256, %s19, [#allocation3], 128, 128, 8
    $region5: #{tpu_custom_call.1} parent=1 // pred_fallthru
      _
    // Predicated region
    $region6: #{tpu_custom_call.1} parent=1 // pred_check
      _
    $region7: #{tpu_custom_call.1} parent=1 // pred_check_branch
      %26 = sbr.rel (0) target = $region9
    $region8: #{tpu_custom_call.1} parent=1 // pred_region
      %s28 = ssub.s32 256, 256
      %29 = vsyncadd [#allocation6], %s28
      %s30 = sshll.u32 [#allocation5], 4
      %s31 = int_to_ptr.vmem [resolvable:$true] %s30
      %36 = dma.hbm_to_vmem [thread:$0]  %s1, 256, %s31, [#allocation6], 128, 128, 8
    $region9: #{tpu_custom_call.1} parent=1 // pred_fallthru
      _
    // Predicated region
    $region10: #{tpu_custom_call.1} parent=1 // pred_check
      _
    $region11: #{tpu_custom_call.1} parent=1 // pred_check_branch
      %38 = sbr.rel (0) target = $region13
    $region12: #{tpu_custom_call.1} parent=1 // pred_region
      %39 = dma.done [#allocation3], 256
    $region13: #{tpu_custom_call.1} parent=1 // pred_fallthru
      _
    // Predicated region
    $region14: #{tpu_custom_call.1} parent=1 // pred_check
      _
    $region15: #{tpu_custom_call.1} parent=1 // pred_check_branch
      %41 = sbr.rel (0) target = $region17
    $region16: #{tpu_custom_call.1} parent=1 // pred_region
      %42 = dma.done [#allocation6], 256
    $region17: #{tpu_custom_call.1} parent=1 // pred_fallthru
      _
    %v43 = vld [vmem:[#allocation2] sm:$0xff]
    %v44 = vld [vmem:[#allocation2 + $0x8] sm:$0xff]
    %v45 = vld [vmem:[#allocation5] sm:$0xff]
    %v46 = vld [vmem:[#allocation5 + $0x8] sm:$0xff]
    %v47 = vmul.f32 %v43, 0.5
    %v48 = vmul.f32 %v44, 0.5
    %v49 = vtanh.pop %v47
    %v50 = vtanh.pop %v48
    %v51 = vmul.f32 %v49, 0.5
    %v52 = vmul.f32 %v50, 0.5
    %v53 = vadd.f32 %v51, 0.5
    %v54 = vadd.f32 %v52, 0.5
    %v55 = vmul.f32 %v53, %v45
    %v56 = vmul.f32 %v54, %v46
    %v57 = vadd.f32 %v55, %v56
    %v58 = vrot.slane %v57, 4
    %v59 = vadd.f32 %v57, %v58
    %v60 = vrot.slane %v59, 2
    %v61 = vadd.f32 %v59, %v60
    %v62 = vrot.slane %v61, 1
    %v63 = vadd.f32 %v61, %v62
    %v64 = vadd.f32 %v63, 0.0
    %v65 = vadd.f32 %v53, %v45
    %v66 = vadd.f32 %v54, %v46
    %v67 = vadd.f32 %v65, %v66
    %v68 = vrot.slane %v67, 4
    %v69 = vadd.f32 %v67, %v68
    %v70 = vrot.slane %v69, 2
    %v71 = vadd.f32 %v69, %v70
    %v72 = vrot.slane %v71, 1
    %v73 = vadd.f32 %v71, %v72
    %v74 = vadd.f32 %v73, 0.0
    %75 = vst [vmem:[#allocation7] sm:$0x1] %v64
    %76 = vst [vmem:[#allocation8] sm:$0x1] %v74
    // Predicated region
    $region18: #{tpu_custom_call.1} parent=1 // pred_check
      _
    $region19: #{tpu_custom_call.1} parent=1 // pred_check_branch
      %78 = sbr.rel (0) target = $region21
    $region20: #{tpu_custom_call.1} parent=1 // pred_region
      %s80 = ssub.s32 16, 16
      %81 = vsyncadd [#allocation4], %s80
      %s83 = sshll.u32 [#allocation7], 4
      %s84 = int_to_ptr.vmem [resolvable:$true] %s83
      %86 = dma.vmem_to_hbm [thread:$0]  %s84, 16, %s2, [#allocation4]
    $region21: #{tpu_custom_call.1} parent=1 // pred_fallthru
      _
    // Predicated region
    $region22: #{tpu_custom_call.1} parent=1 // pred_check
      _
    $region23: #{tpu_custom_call.1} parent=1 // pred_check_branch
      %88 = sbr.rel (0) target = $region25
    $region24: #{tpu_custom_call.1} parent=1 // pred_region
      %s90 = ssub.s32 16, 16
      %91 = vsyncadd [#allocation9], %s90
      %s93 = sshll.u32 [#allocation8], 4
      %s94 = int_to_ptr.vmem [resolvable:$true] %s93
      %96 = dma.vmem_to_hbm [thread:$0]  %s94, 16, %s3, [#allocation9]
    $region25: #{tpu_custom_call.1} parent=1 // pred_fallthru
      _
    // Predicated region
    $region26: #{tpu_custom_call.1} parent=1 // pred_check
      _
    $region27: #{tpu_custom_call.1} parent=1 // pred_check_branch
      %98 = sbr.rel (0) target = $region29
    $region28: #{tpu_custom_call.1} parent=1 // pred_region
      %99 = dma.done [#allocation4], 16
    $region29: #{tpu_custom_call.1} parent=1 // pred_fallthru
      _
    // Predicated region
    $region30: #{tpu_custom_call.1} parent=1 // pred_check
      _
    $region31: #{tpu_custom_call.1} parent=1 // pred_check_branch
      %101 = sbr.rel (0) target = $region33
    $region32: #{tpu_custom_call.1} parent=1 // pred_region
      %102 = dma.done [#allocation9], 16
    $region33: #{tpu_custom_call.1} parent=1 // pred_fallthru
      _
    %103 = vsyncpa [#allocation3], 1
    %104 = vsyncpa [#allocation6], 1
    %105 = vsyncpa [#allocation4], 1
    %106 = vsyncpa [#allocation9], 1

</llo_original>
